<compile_context>
chip_gen: v5e
topology: v5e:2x2
jax: 0.10.0
libtpu: 0.0.40
codegen_flags: <defaults>
</compile_context>

<pallas_src>
from functools import partial

import jax
import jax.numpy as jnp
from jax.experimental import pallas as pl
from jax.experimental.pallas import tpu as pltpu

_LANES = 128          # vreg lane width
_SUBLANES = 8         # vreg sublane depth (32-bit)
_MAX_LANE_WIDTH = 2048


def _flatten_copy_kernel(x_ref, o_ref):
    # Straight copy: back-to-back full-vreg vld/vst. Binding resource is HBM BW.
    o_ref[...] = x_ref[...]


def _largest_multiple_divisor(dim, unit, cap):
    """Largest multiple of `unit` that divides `dim` and is <= cap (or None)."""
    best = None
    m = unit
    limit = min(dim, cap)
    while m <= limit:
        if dim % m == 0:
            best = m
        m += unit
    return best


def _choose_slab(total, n, f):
    """Pick a lane/sublane-dense 2D view (rows, cols) of the flat data."""
    if total % (_SUBLANES * _LANES) == 0:
        # cols must divide total/8 so rows = total/cols is a multiple of 8:
        # sublane-dense AND lane-dense blocks -> unmasked stores.
        cols = _largest_multiple_divisor(total // _SUBLANES, _LANES,
                                         _MAX_LANE_WIDTH)
        if cols is not None:
            return total // cols, cols
    if total % _LANES == 0:
        # Lane-dense only.
        cols = _largest_multiple_divisor(total, _LANES, _MAX_LANE_WIDTH)
        if cols is not None:
            return total // cols, cols
    # Awkward element counts: keep the natural (n, f) view; rows are tiled in
    # flatten() with the full last dim f (block == full dim waives the 128
    # constraint on that axis).
    return n, f


def _choose_row_tile(rows, row_unit, target_rows):
    """Row tile: divides rows, multiple of row_unit, <= target when possible,
    and yields >= 2 grid steps when rows allow it (v7x megacore + pipelining)."""
    if rows % row_unit != 0:
        return rows  # must take the full dim (waives the sublane constraint)
    tn = _largest_multiple_divisor(rows, row_unit, max(row_unit, target_rows))
    if tn is None:
        tn = rows
    if tn == rows and rows > row_unit:
        # Prefer at least 2 parallel grid steps over a single monolithic block.
        half = _largest_multiple_divisor(rows, row_unit, rows // 2)
        if half is not None:
            tn = half
    return tn


def _tpu_config():
    """(block_bytes, vmem_limit_bytes) tuned per TPU generation."""
    gen = None
    try:
        kind = jax.devices()[0].device_kind.lower()
        for g in (7, 6, 5, 4):
            if "v%d" % g in kind:
                gen = g
                break
    except Exception:
        pass
    if gen is None or gen <= 5:
        # v5e: 16 MiB scoped-VMEM default; 2 MiB blocks (4 bufs = 8 MiB) are
        # already within ~7% of the 820 GB/s roofline — don't bump blindly.
        return 2 << 20, None
    if gen == 6:
        # v6e: 128 MiB VMEM, ~1.4 TB/s HBM; bigger tiles push toward roofline.
        return 8 << 20, 64 << 20
    # v7x: 64 MiB physical VMEM, 3.2 TB/s HBM; 8 MiB blocks amortize the
    # ~0.35us/step overhead, 4 x 8 MiB = 32 MiB fits under a 40 MiB limit.
    return 8 << 20, 40 << 20


@partial(jax.jit, static_argnames=("use_kernel",))
def flatten(x, use_kernel=True):
    """Equivalent of torch `x.view(x.size(0), -1)` for a contiguous input."""
    n = x.shape[0]
    f = 1
    for d in x.shape[1:]:
        f *= d

    if not use_kernel or n == 0 or f == 0:
        # Flatten is a pure view: under jit this is metadata-only (the real
        # optimization — no HBM traffic at all).
        return x.reshape(n, f)

    total = n * f
    itemsize = jnp.dtype(x.dtype).itemsize
    block_bytes, vmem_limit = _tpu_config()

    rows, cols = _choose_slab(total, n, f)
    x_slab = x.reshape(rows, cols)        # metadata-only under jit

    target_rows = max(1, block_bytes // max(1, cols * itemsize))
    tn = _choose_row_tile(rows, _SUBLANES, target_rows)
    grid_rows = rows // tn

    cp_kwargs = dict(dimension_semantics=("parallel",))
    if vmem_limit is not None:
        cp_kwargs["vmem_limit_bytes"] = vmem_limit

    # Bandwidth-only op: tell XLA so it schedules surrounding work around it.
    cost = pl.CostEstimate(flops=0, transcendentals=0,
                           bytes_accessed=2 * total * itemsize)

    y_slab = pl.pallas_call(
        _flatten_copy_kernel,
        out_shape=jax.ShapeDtypeStruct((rows, cols), x.dtype),
        grid=(grid_rows,),
        in_specs=[pl.BlockSpec((tn, cols), lambda i: (i, 0))],
        out_specs=pl.BlockSpec((tn, cols), lambda i: (i, 0)),
        compiler_params=pltpu.CompilerParams(**cp_kwargs),
        cost_estimate=cost,
    )(x_slab)

    return y_slab.reshape(n, f)           # metadata-only under jit


if __name__ == "__main__":
    key = jax.random.PRNGKey(0)
    # Small NCHW input consistent with the module: batch=2, channels=4, 16x16.
    x = jax.random.normal(key, (2, 4, 16, 16), dtype=jnp.float32)

    y = flatten(x)                         # Pallas identity-copy path
    jax.block_until_ready(y)

    # Reference semantics: x.view(N, -1) == reshape.
    y_ref = x.reshape(x.shape[0], -1)
    assert y.shape == (2, 4 * 16 * 16), y.shape
    assert y.dtype == x.dtype
    assert jnp.array_equal(y, y_ref)

    # Metadata-only fast path must agree too.
    y_view = flatten(x, use_kernel=False)
    jax.block_until_ready(y_view)
    assert jnp.array_equal(y_view, y_ref)

    print("KERNEL_OK")
</pallas_src>

<mosaic_0001>
module attributes {stable_mosaic.version = 11 : i64} {
  func.func @_flatten_copy_kernel(%arg0: i32, %arg1: memref<8x256xf32, #tpu.memory_space<vmem>>, %arg2: memref<8x256xf32, #tpu.memory_space<vmem>>) attributes {dimension_semantics = [#tpu.dimension_semantics<parallel>], iteration_bounds = array<i64: 1>, scalar_prefetch = 0 : i64, scratch_operands = 0 : i64, tpu.core_type = #tpu.core_type<tc>, window_params = [{transform_indices = @transform_0, window_bounds = array<i64: 8, 256>}, {transform_indices = @transform_1, window_bounds = array<i64: 8, 256>}]} {
    %c0 = arith.constant 0 : index
    %c0_0 = arith.constant 0 : index
    %0 = vector.load %arg1[%c0, %c0_0] : memref<8x256xf32, #tpu.memory_space<vmem>>, vector<8x256xf32>
    %c0_1 = arith.constant 0 : index
    %c0_2 = arith.constant 0 : index
    %1 = vector.load %arg2[%c0_1, %c0_2] : memref<8x256xf32, #tpu.memory_space<vmem>>, vector<8x256xf32>
    tpu.vector_store %arg2[%c0_1, %c0_2], %0 {strides = array<i32>} : memref<8x256xf32, #tpu.memory_space<vmem>>, vector<8x256xf32>,
    return
  }
  func.func @transform_0(%arg0: i32) -> (i32, i32) {
    %c0_i32 = arith.constant 0 : i32
    %c0_i32_0 = arith.constant 0 : i32
    return %arg0, %c0_i32 : i32, i32
  }
  func.func @transform_1(%arg0: i32) -> (i32, i32) {
    %c0_i32 = arith.constant 0 : i32
    %c0_i32_0 = arith.constant 0 : i32
    return %arg0, %c0_i32 : i32, i32
  }
}

</mosaic_0001>

<llo_original>
// kernel: flatten.1
$region0: #{flatten.1}
  #allocation0 [shape = 'u32[]', space=smem, size = 0x4, offset = 0x4, fixed_abs, tag = 'smem constant byte address 0x4 - core index']
  #allocation1 [shape = 'u32[72,128]{1,0:T(1,128)}', space=vmem, size = 0x9000, scoped, tag = 'internal scratch']
  %s0 = inlined_call_operand.vmem [shape: f32[8,256], index: 0, kind: input, shape index: {}]
  %s1 = inlined_call_operand.vmem [shape: f32[8,256], index: 1, kind: output, shape index: {}]
  %s2 = sld [smem:[#allocation0]]
  $region14: #{flatten.1} parent=0
    _
  %s4 = ssub.s32 1, %s2
  %s5 = scalar_select 0, %s4, %s2
  // Predicated region
  $region2: #{flatten.1} parent=0 // pred_check
    _
  $region3: #{flatten.1} parent=0 // pred_check_branch
    %7 = sbr.rel (0) target = $region5
  $region4: #{flatten.1} parent=0 // pred_region
    _
  $region5: #{flatten.1} parent=0 // pred_fallthru
    _
  %v8 = vld [vmem:[%s0] sm:$0xff]
  %v9 = vld [vmem:[%s0 + $0x8] sm:$0xff]
  %10 = vst [vmem:[%s1] sm:$0xff] %v8
  %11 = vst [vmem:[%s1 + $0x8] sm:$0xff] %v9
  // Predicated region
  $region6: #{flatten.1} parent=0 // pred_check
    _
  $region7: #{flatten.1} parent=0 // pred_check_branch
    %13 = sbr.rel (0) target = $region9
  $region8: #{flatten.1} parent=0 // pred_region
    _
  $region9: #{flatten.1} parent=0 // pred_fallthru
    _
  // Predicated region
  $region10: #{flatten.1} parent=0 // pred_check
    _
  $region11: #{flatten.1} parent=0 // pred_check_branch
    %15 = sbr.rel (0) target = $region13
  $region12: #{flatten.1} parent=0 // pred_region
    _
  $region13: #{flatten.1} parent=0 // pred_fallthru
    _

</llo_original>
